<compile_context>
chip_gen: v5e
topology: v5e:2x2
jax: 0.10.0
libtpu: 0.0.40
codegen_flags: <defaults>
</compile_context>

<pallas_src>
import jax
import jax.numpy as jnp
from jax import lax
from jax.experimental import pallas as pl
from jax.experimental.pallas import tpu as pltpu  # noqa: F401  (TPU backend)


def _manager_kernel(z_ref, h_ref, c_ref, wsp_ref, wih_ref, whh_ref, misc_ref, out_ref):
    d = z_ref.shape[1]

    z = z_ref[...]
    h = h_ref[...]
    c = c_ref[...]

    # misc layout (packed once host-side):
    #   row 0, [:d]  -> b_space
    #   row 1, [:]   -> b_ih + b_hh   (gate order i, f, g, o)
    #   row 2, [:d]  -> value-head weight row
    #   row 3, [0]   -> value-head bias
    b_space = misc_ref[0:1, 0:d]        # (1, d)
    b_gates = misc_ref[1:2, :]          # (1, 4d)
    wv_row = misc_ref[2:3, 0:d]         # (1, d)
    bv = misc_ref[3:4, 0:1]             # (1, 1)

    # f_Mspace: Linear(d, d) + ReLU
    s = jnp.dot(z, wsp_ref[...], preferred_element_type=jnp.float32) + b_space
    s = jnp.maximum(s, 0.0)

    # LSTMCell: two fused lane-dense matmuls producing all 4 gates at once.
    gates = (
        jnp.dot(s, wih_ref[...], preferred_element_type=jnp.float32)
        + jnp.dot(h, whh_ref[...], preferred_element_type=jnp.float32)
        + b_gates
    )  # (B, 4d)

    i_g = jax.nn.sigmoid(gates[:, 0:d])
    f_g = jax.nn.sigmoid(gates[:, d:2 * d])
    g_g = jnp.tanh(gates[:, 2 * d:3 * d])
    o_g = jax.nn.sigmoid(gates[:, 3 * d:4 * d])

    c_new = f_g * c + i_g * g_g
    g_hat = o_g * jnp.tanh(c_new)  # new hidden state

    # F.normalize: g_hat / max(||g_hat||_2, 1e-12)  ==  g_hat * rsqrt(max(sumsq, 1e-24))
    sumsq = jnp.sum(g_hat * g_hat, axis=1, keepdims=True)
    g_out = g_hat * lax.rsqrt(jnp.maximum(sumsq, 1e-24))

    # value head: d -> 1 as a VPU multiply + reduce (MXU matmul would waste a tile).
    value = jnp.sum(g_hat * wv_row, axis=1, keepdims=True) + bv          # (B, 1)
    value_b = jnp.broadcast_to(value, g_hat.shape)                       # (B, d)

    # Single lane-dense output slab: [ s | g | c_new | value (broadcast) ]
    out_ref[...] = jnp.concatenate([s, g_out, c_new, value_b], axis=1)


def _full_spec(shape):
    return pl.BlockSpec(shape, lambda: (0,) * len(shape))


def init_manager_params(key, d):
    """Deterministic PyTorch-style init (uniform +/- 1/sqrt(fan_in))."""
    ks = jax.random.split(key, 8)
    bound = 1.0 / jnp.sqrt(jnp.asarray(d, jnp.float32))

    def u(k, shape):
        return jax.random.uniform(k, shape, jnp.float32, -bound, bound)

    return {
        "w_space": u(ks[0], (d, d)),       # Linear(d, d) weight (out, in)
        "b_space": u(ks[1], (d,)),
        "w_ih": u(ks[2], (4 * d, d)),      # LSTMCell weight_ih (gate order i,f,g,o)
        "b_ih": u(ks[3], (4 * d,)),
        "w_hh": u(ks[4], (4 * d, d)),      # LSTMCell weight_hh
        "b_hh": u(ks[5], (4 * d,)),
        "w_v": u(ks[6], (1, d)),           # Linear(d, 1) weight
        "b_v": u(ks[7], (1,)),
    }


def pack_manager_params(params):
    """One-time packing: transposes, gate fusion, bias folding. Call once at init,
    not per step, so the recurrent step only launches the kernel."""
    d = params["w_space"].shape[0]
    w_space_t = jnp.asarray(params["w_space"], jnp.float32).T          # (d, d)
    w_ih_t = jnp.asarray(params["w_ih"], jnp.float32).T                # (d, 4d)
    w_hh_t = jnp.asarray(params["w_hh"], jnp.float32).T                # (d, 4d)
    b_gates = (params["b_ih"] + params["b_hh"]).astype(jnp.float32)    # (4d,)

    misc = jnp.zeros((4, 4 * d), jnp.float32)
    misc = misc.at[0, :d].set(params["b_space"].astype(jnp.float32))
    misc = misc.at[1, :].set(b_gates)
    misc = misc.at[2, :d].set(params["w_v"][0].astype(jnp.float32))
    misc = misc.at[3, 0].set(params["b_v"][0].astype(jnp.float32))

    return {"w_space_t": w_space_t, "w_ih_t": w_ih_t, "w_hh_t": w_hh_t, "misc": misc}


@jax.jit
def manager_forward(z, states_M, packed, reset_value_grad=None):
    """reset_value_grad accepted for API parity; unused (same as the PyTorch forward)."""
    del reset_value_grad
    h0, c0 = states_M
    B, d = z.shape

    inputs = (z, h0, c0,
              packed["w_space_t"], packed["w_ih_t"], packed["w_hh_t"], packed["misc"])

    slab = pl.pallas_call(
        _manager_kernel,
        out_shape=jax.ShapeDtypeStruct((B, 4 * d), jnp.float32),
        in_specs=[_full_spec(x.shape) for x in inputs],
        out_specs=_full_spec((B, 4 * d)),
    )(*inputs)

    s = slab[:, 0:d]
    g = slab[:, d:2 * d]
    c_new = slab[:, 2 * d:3 * d]
    value = slab[:, 3 * d:3 * d + 1]

    # Faithful to the PyTorch quirk: returned states_M is the cell state tensor only.
    return value, g, s, c_new


def _reference_forward(z, states_M, params):
    """Pure-JAX reference for sanity checking."""
    h0, c0 = states_M
    d = z.shape[1]
    s = jax.nn.relu(z @ params["w_space"].T + params["b_space"])
    gates = s @ params["w_ih"].T + params["b_ih"] + h0 @ params["w_hh"].T + params["b_hh"]
    i, f, g_, o = (gates[:, k * d:(k + 1) * d] for k in range(4))
    c_new = jax.nn.sigmoid(f) * c0 + jax.nn.sigmoid(i) * jnp.tanh(g_)
    g_hat = jax.nn.sigmoid(o) * jnp.tanh(c_new)
    norm = jnp.sqrt(jnp.sum(g_hat * g_hat, axis=1, keepdims=True))
    g = g_hat / jnp.maximum(norm, 1e-12)
    value = g_hat @ params["w_v"].T + params["b_v"]
    return value, g, s, c_new


if __name__ == "__main__":
    B, d = 8, 32  # small shapes: batch=8, hidden=32
    key = jax.random.PRNGKey(0)
    k_params, k_z, k_h, k_c = jax.random.split(key, 4)

    params = init_manager_params(k_params, d)
    packed = pack_manager_params(params)

    z = jax.random.normal(k_z, (B, d), jnp.float32)
    states_M = (jax.random.uniform(k_h, (B, d), jnp.float32),
                jax.random.uniform(k_c, (B, d), jnp.float32))

    outs = manager_forward(z, states_M, packed, reset_value_grad=False)
    outs = jax.block_until_ready(outs)

    refs = _reference_forward(z, states_M, params)
    for o, r in zip(outs, refs):
        assert o.shape == r.shape and o.dtype == r.dtype
        assert jnp.max(jnp.abs(o - r)) < 1e-4

    print("KERNEL_OK")
</pallas_src>

<mosaic_0001>
module attributes {stable_mosaic.version = 11 : i64} {
  func.func @_manager_kernel(%arg0: memref<8x32xf32, #tpu.memory_space<vmem>>, %arg1: memref<8x32xf32, #tpu.memory_space<vmem>>, %arg2: memref<8x32xf32, #tpu.memory_space<vmem>>, %arg3: memref<32x32xf32, #tpu.memory_space<vmem>>, %arg4: memref<32x128xf32, #tpu.memory_space<vmem>>, %arg5: memref<32x128xf32, #tpu.memory_space<vmem>>, %arg6: memref<4x128xf32, #tpu.memory_space<vmem>>, %arg7: memref<8x128xf32, #tpu.memory_space<vmem>>) attributes {dimension_semantics = [], scalar_prefetch = 0 : i64, scratch_operands = 0 : i64, tpu.core_type = #tpu.core_type<tc>} {
    %c0 = arith.constant 0 : index
    %c0_0 = arith.constant 0 : index
    %0 = vector.load %arg0[%c0, %c0_0] : memref<8x32xf32, #tpu.memory_space<vmem>>, vector<8x32xf32>
    %c0_1 = arith.constant 0 : index
    %c0_2 = arith.constant 0 : index
    %1 = vector.load %arg1[%c0_1, %c0_2] : memref<8x32xf32, #tpu.memory_space<vmem>>, vector<8x32xf32>
    %c0_3 = arith.constant 0 : index
    %c0_4 = arith.constant 0 : index
    %2 = vector.load %arg2[%c0_3, %c0_4] : memref<8x32xf32, #tpu.memory_space<vmem>>, vector<8x32xf32>
    %c0_5 = arith.constant 0 : index
    %c0_6 = arith.constant 0 : index
    %3 = vector.load %arg6[%c0_5, %c0_6] : memref<4x128xf32, #tpu.memory_space<vmem>>, vector<1x32xf32>
    %c1 = arith.constant 1 : index
    %c0_7 = arith.constant 0 : index
    %4 = vector.load %arg6[%c1, %c0_7] : memref<4x128xf32, #tpu.memory_space<vmem>>, vector<1x128xf32>
    %c2 = arith.constant 2 : index
    %c0_8 = arith.constant 0 : index
    %5 = vector.load %arg6[%c2, %c0_8] : memref<4x128xf32, #tpu.memory_space<vmem>>, vector<1x32xf32>
    %c3 = arith.constant 3 : index
    %c0_9 = arith.constant 0 : index
    %6 = vector.load %arg6[%c3, %c0_9] : memref<4x128xf32, #tpu.memory_space<vmem>>, vector<1x1xf32>
    %c0_10 = arith.constant 0 : index
    %c0_11 = arith.constant 0 : index
    %7 = vector.load %arg3[%c0_10, %c0_11] : memref<32x32xf32, #tpu.memory_space<vmem>>, vector<32x32xf32>
    %cst = arith.constant dense<0.000000e+00> : vector<8x32xf32>
    %8 = tpu.matmul %0, %7, %cst {dimension_numbers = #tpu.dot_dimension_numbers<[1], [0], [0], [1], [0, 0, 1, 1], [], []>} : vector<8x32xf32>, vector<32x32xf32>, vector<8x32xf32> -> vector<8x32xf32>
    %9 = vector.broadcast %3 : vector<1x32xf32> to vector<8x32xf32>
    %10 = arith.addf %8, %9 : vector<8x32xf32>
    %cst_12 = arith.constant 0.000000e+00 : f32
    %11 = vector.broadcast %cst_12 : f32 to vector<8x32xf32>
    %12 = arith.maximumf %10, %11 : vector<8x32xf32>
    %c0_13 = arith.constant 0 : index
    %c0_14 = arith.constant 0 : index
    %13 = vector.load %arg4[%c0_13, %c0_14] : memref<32x128xf32, #tpu.memory_space<vmem>>, vector<32x128xf32>
    %cst_15 = arith.constant dense<0.000000e+00> : vector<8x128xf32>
    %14 = tpu.matmul %12, %13, %cst_15 {dimension_numbers = #tpu.dot_dimension_numbers<[1], [0], [0], [1], [0, 0, 1, 1], [], []>} : vector<8x32xf32>, vector<32x128xf32>, vector<8x128xf32> -> vector<8x128xf32>
    %c0_16 = arith.constant 0 : index
    %c0_17 = arith.constant 0 : index
    %15 = vector.load %arg5[%c0_16, %c0_17] : memref<32x128xf32, #tpu.memory_space<vmem>>, vector<32x128xf32>
    %cst_18 = arith.constant dense<0.000000e+00> : vector<8x128xf32>
    %16 = tpu.matmul %1, %15, %cst_18 {dimension_numbers = #tpu.dot_dimension_numbers<[1], [0], [0], [1], [0, 0, 1, 1], [], []>} : vector<8x32xf32>, vector<32x128xf32>, vector<8x128xf32> -> vector<8x128xf32>
    %17 = arith.addf %14, %16 : vector<8x128xf32>
    %18 = vector.broadcast %4 : vector<1x128xf32> to vector<8x128xf32>
    %19 = arith.addf %17, %18 : vector<8x128xf32>
    %20 = vector.extract_strided_slice %19 {offsets = [0, 0], sizes = [8, 32], strides = [1, 1]} : vector<8x128xf32> to vector<8x32xf32>
    %21 = arith.negf %20 : vector<8x32xf32>
    %22 = math.exp %21 : vector<8x32xf32>
    %cst_19 = arith.constant 1.000000e+00 : f32
    %23 = vector.broadcast %cst_19 : f32 to vector<8x32xf32>
    %24 = arith.addf %23, %22 : vector<8x32xf32>
    %25 = arith.divf %23, %24 : vector<8x32xf32>
    %26 = vector.extract_strided_slice %19 {offsets = [0, 32], sizes = [8, 32], strides = [1, 1]} : vector<8x128xf32> to vector<8x32xf32>
    %27 = arith.negf %26 : vector<8x32xf32>
    %28 = math.exp %27 : vector<8x32xf32>
    %cst_20 = arith.constant 1.000000e+00 : f32
    %29 = vector.broadcast %cst_20 : f32 to vector<8x32xf32>
    %30 = arith.addf %29, %28 : vector<8x32xf32>
    %31 = arith.divf %29, %30 : vector<8x32xf32>
    %32 = vector.extract_strided_slice %19 {offsets = [0, 64], sizes = [8, 32], strides = [1, 1]} : vector<8x128xf32> to vector<8x32xf32>
    %33 = math.tanh %32 : vector<8x32xf32>
    %34 = vector.extract_strided_slice %19 {offsets = [0, 96], sizes = [8, 32], strides = [1, 1]} : vector<8x128xf32> to vector<8x32xf32>
    %35 = arith.negf %34 : vector<8x32xf32>
    %36 = math.exp %35 : vector<8x32xf32>
    %cst_21 = arith.constant 1.000000e+00 : f32
    %37 = vector.broadcast %cst_21 : f32 to vector<8x32xf32>
    %38 = arith.addf %37, %36 : vector<8x32xf32>
    %39 = arith.divf %37, %38 : vector<8x32xf32>
    %40 = arith.mulf %31, %2 : vector<8x32xf32>
    %41 = arith.mulf %25, %33 : vector<8x32xf32>
    %42 = arith.addf %40, %41 : vector<8x32xf32>
    %43 = math.tanh %42 : vector<8x32xf32>
    %44 = arith.mulf %39, %43 : vector<8x32xf32>
    %45 = arith.mulf %44, %44 : vector<8x32xf32>
    %cst_22 = arith.constant dense<0.000000e+00> : vector<8xf32>
    %46 = vector.multi_reduction <add>, %45, %cst_22 [1] : vector<8x32xf32> to vector<8xf32>
    %47 = vector.shape_cast %46 : vector<8xf32> to vector<8x1xf32>
    %cst_23 = arith.constant 1.000000e-24 : f32
    %48 = vector.broadcast %cst_23 : f32 to vector<8x1xf32>
    %49 = arith.maximumf %47, %48 : vector<8x1xf32>
    %50 = math.rsqrt %49 : vector<8x1xf32>
    %51 = vector.broadcast %50 : vector<8x1xf32> to vector<8x32xf32>
    %52 = arith.mulf %44, %51 : vector<8x32xf32>
    %53 = vector.broadcast %5 : vector<1x32xf32> to vector<8x32xf32>
    %54 = arith.mulf %44, %53 : vector<8x32xf32>
    %cst_24 = arith.constant dense<0.000000e+00> : vector<8xf32>
    %55 = vector.multi_reduction <add>, %54, %cst_24 [1] : vector<8x32xf32> to vector<8xf32>
    %56 = vector.shape_cast %55 : vector<8xf32> to vector<8x1xf32>
    %57 = vector.broadcast %6 : vector<1x1xf32> to vector<8x1xf32>
    %58 = arith.addf %56, %57 : vector<8x1xf32>
    %59 = vector.shape_cast %58 : vector<8x1xf32> to vector<8x1xf32>
    %60 = vector.broadcast %59 : vector<8x1xf32> to vector<8x32xf32>
    %61 = tpu.concatenate %12, %52, %42, %60 in 1 : vector<8x32xf32>, vector<8x32xf32>, vector<8x32xf32>, vector<8x32xf32> -> vector<8x128xf32>
    %c0_25 = arith.constant 0 : index
    %c0_26 = arith.constant 0 : index
    %62 = vector.load %arg7[%c0_25, %c0_26] : memref<8x128xf32, #tpu.memory_space<vmem>>, vector<8x128xf32>
    tpu.vector_store %arg7[%c0_25, %c0_26], %61 {strides = array<i32>} : memref<8x128xf32, #tpu.memory_space<vmem>>, vector<8x128xf32>,
    return
  }
}

</mosaic_0001>

<llo_original>
// kernel: manager_forward.1
$region0: #{manager_forward.1}
  #allocation0 [shape = 'u32[]', space=smem, size = 0x4, offset = 0x4, fixed_abs, tag = 'smem constant byte address 0x4 - core index']
  #allocation1 [shape = 'u32[72,128]{1,0:T(1,128)}', space=vmem, size = 0x9000, scoped, tag = 'internal scratch']
  %s0 = inlined_call_operand.hbm [shape: f32[8,32], index: 0, kind: input, shape index: {}]
  %s1 = inlined_call_operand.hbm [shape: f32[8,32], index: 1, kind: input, shape index: {}]
  %s2 = inlined_call_operand.hbm [shape: f32[8,32], index: 2, kind: input, shape index: {}]
  %s3 = inlined_call_operand.hbm [shape: f32[32,32], index: 3, kind: input, shape index: {}]
  %s4 = inlined_call_operand.hbm [shape: f32[32,128], index: 4, kind: input, shape index: {}]
  %s5 = inlined_call_operand.hbm [shape: f32[32,128], index: 5, kind: input, shape index: {}]
  %s6 = inlined_call_operand.hbm [shape: f32[4,128], index: 6, kind: input, shape index: {}]
  %s7 = inlined_call_operand.vmem [shape: f32[8,128], index: 7, kind: output, shape index: {}]
  %s8 = sld [smem:[#allocation0]]
  $region66: #{manager_forward.1} parent=0
    _
  %s10 = ssub.s32 1, %s8
  %s11 = scalar_select 0, %s10, %s8
  $region1: #{manager_forward.1} parent=0
    #allocation2 [shape = 'u8[4096]{0}', space=vmem, size = 0x1000, scoped, tag = 'input window, operand 0, single buffered']
    #allocation3 [shape = 's32[1]{0}', space=sflag, size = 0x4, scoped, tag = 'scoped memory for manager_forward.1']
    #allocation4 [shape = 'u8[4096]{0}', space=vmem, size = 0x1000, scoped, tag = 'input window, operand 1, single buffered']
    #allocation5 [shape = 's32[1]{0}', space=sflag, size = 0x4, scoped, tag = 'scoped memory for manager_forward.1']
    #allocation6 [shape = 'u8[4096]{0}', space=vmem, size = 0x1000, scoped, tag = 'input window, operand 2, single buffered']
    #allocation7 [shape = 'u8[16384]{0}', space=vmem, size = 0x4000, scoped, tag = 'input window, operand 3, single buffered']
    #allocation8 [shape = 's32[1]{0}', space=sflag, size = 0x4, scoped, tag = 'scoped memory for manager_forward.1']
    #allocation9 [shape = 'u8[16384]{0}', space=vmem, size = 0x4000, scoped, tag = 'input window, operand 4, single buffered']
    #allocation10 [shape = 'u8[16384]{0}', space=vmem, size = 0x4000, scoped, tag = 'input window, operand 5, single buffered']
    #allocation11 [shape = 's32[1]{0}', space=sflag, size = 0x4, scoped, tag = 'scoped memory for manager_forward.1']
    #allocation12 [shape = 'u8[2048]{0}', space=vmem, size = 0x800, scoped, tag = 'input window, operand 6, single buffered']
    %12 = vsyncpa [#allocation3], 0
    %13 = vsyncpa [#allocation5], 0
    %14 = vsyncpa [#allocation8], 0
    %15 = vsyncpa [#allocation11], 0
    // Predicated region
    $region2: #{manager_forward.1} parent=1 // pred_check
      _
    $region3: #{manager_forward.1} parent=1 // pred_check_branch
      %17 = sbr.rel (0) target = $region5
    $region4: #{manager_forward.1} parent=1 // pred_region
      %19 = vsyncadd [#allocation3], 0
      %s21 = sshll.u32 %s0, 4
      %s22 = int_to_ptr.hbm [resolvable:$true] %s21
      %s23 = sshll.u32 [#allocation2], 4
      %s24 = int_to_ptr.vmem [resolvable:$true] %s23
      %26 = dma.hbm_to_vmem [thread:$0]  %s22, 128, %s24, [#allocation3]
    $region5: #{manager_forward.1} parent=1 // pred_fallthru
      _
    // Predicated region
    $region6: #{manager_forward.1} parent=1 // pred_check
      _
    $region7: #{manager_forward.1} parent=1 // pred_check_branch
      %28 = sbr.rel (0) target = $region9
    $region8: #{manager_forward.1} parent=1 // pred_region
      %30 = vsyncadd [#allocation5], 0
      %s32 = sshll.u32 %s1, 4
      %s33 = int_to_ptr.hbm [resolvable:$true] %s32
      %s34 = sshll.u32 [#allocation4], 4
      %s35 = int_to_ptr.vmem [resolvable:$true] %s34
      %37 = dma.hbm_to_vmem [thread:$0]  %s33, 128, %s35, [#allocation5]
    $region9: #{manager_forward.1} parent=1 // pred_fallthru
      _
    // Predicated region
    $region10: #{manager_forward.1} parent=1 // pred_check
      _
    $region11: #{manager_forward.1} parent=1 // pred_check_branch
      %39 = sbr.rel (0) target = $region13
    $region12: #{manager_forward.1} parent=1 // pred_region
      %41 = vsyncadd [#allocation5], 0
      %s43 = sshll.u32 %s2, 4
      %s44 = int_to_ptr.hbm [resolvable:$true] %s43
      %s45 = sshll.u32 [#allocation6], 4
      %s46 = int_to_ptr.vmem [resolvable:$true] %s45
      %48 = dma.hbm_to_vmem [thread:$0]  %s44, 128, %s46, [#allocation5]
    $region13: #{manager_forward.1} parent=1 // pred_fallthru
      _
    // Predicated region
    $region14: #{manager_forward.1} parent=1 // pred_check
      _
    $region15: #{manager_forward.1} parent=1 // pred_check_branch
      %50 = sbr.rel (0) target = $region17
    $region16: #{manager_forward.1} parent=1 // pred_region
      %52 = vsyncadd [#allocation8], 0
      %s53 = sshll.u32 %s3, 4
      %s54 = int_to_ptr.hbm [resolvable:$true] %s53
      %s55 = sshll.u32 [#allocation7], 4
      %s56 = int_to_ptr.vmem [resolvable:$true] %s55
      %61 = dma.hbm_to_vmem [thread:$0]  %s54, 512, %s56, [#allocation8], 128, 128, 8
    $region17: #{manager_forward.1} parent=1 // pred_fallthru
      _
    // Predicated region
    $region18: #{manager_forward.1} parent=1 // pred_check
      _
    $region19: #{manager_forward.1} parent=1 // pred_check_branch
      %63 = sbr.rel (0) target = $region21
    $region20: #{manager_forward.1} parent=1 // pred_region
      %65 = vsyncadd [#allocation8], 0
      %s66 = sshll.u32 %s4, 4
      %s67 = int_to_ptr.hbm [resolvable:$true] %s66
      %s68 = sshll.u32 [#allocation9], 4
      %s69 = int_to_ptr.vmem [resolvable:$true] %s68
      %74 = dma.hbm_to_vmem [thread:$0]  %s67, 512, %s69, [#allocation8], 128, 128, 8
    $region21: #{manager_forward.1} parent=1 // pred_fallthru
      _
    // Predicated region
    $region22: #{manager_forward.1} parent=1 // pred_check
      _
    $region23: #{manager_forward.1} parent=1 // pred_check_branch
      %76 = sbr.rel (0) target = $region25
    $region24: #{manager_forward.1} parent=1 // pred_region
      %78 = vsyncadd [#allocation11], 0
      %s79 = sshll.u32 %s5, 4
      %s80 = int_to_ptr.hbm [resolvable:$true] %s79
      %s81 = sshll.u32 [#allocation10], 4
      %s82 = int_to_ptr.vmem [resolvable:$true] %s81
      %87 = dma.hbm_to_vmem [thread:$0]  %s80, 512, %s82, [#allocation11], 128, 128, 8
    $region25: #{manager_forward.1} parent=1 // pred_fallthru
      _
    // Predicated region
    $region26: #{manager_forward.1} parent=1 // pred_check
      _
    $region27: #{manager_forward.1} parent=1 // pred_check_branch
      %89 = sbr.rel (0) target = $region29
    $region28: #{manager_forward.1} parent=1 // pred_region
      %91 = vsyncadd [#allocation11], 0
      %s93 = sshll.u32 %s6, 4
      %s94 = int_to_ptr.hbm [resolvable:$true] %s93
      %s95 = sshll.u32 [#allocation12], 4
      %s96 = int_to_ptr.vmem [resolvable:$true] %s95
      %98 = dma.hbm_to_vmem [thread:$0]  %s94, 64, %s96, [#allocation11]
    $region29: #{manager_forward.1} parent=1 // pred_fallthru
      _
    // Predicated region
    $region30: #{manager_forward.1} parent=1 // pred_check
      _
    $region31: #{manager_forward.1} parent=1 // pred_check_branch
      %100 = sbr.rel (0) target = $region33
    $region32: #{manager_forward.1} parent=1 // pred_region
      %102 = dma.done [#allocation3], 128
    $region33: #{manager_forward.1} parent=1 // pred_fallthru
      _
    // Predicated region
    $region34: #{manager_forward.1} parent=1 // pred_check
      _
    $region35: #{manager_forward.1} parent=1 // pred_check_branch
      %104 = sbr.rel (0) target = $region37
    $region36: #{manager_forward.1} parent=1 // pred_region
      %106 = dma.done [#allocation5], 128
    $region37: #{manager_forward.1} parent=1 // pred_fallthru
      _
    // Predicated region
    $region38: #{manager_forward.1} parent=1 // pred_check
      _
    $region39: #{manager_forward.1} parent=1 // pred_check_branch
      %108 = sbr.rel (0) target = $region41
    $region40: #{manager_forward.1} parent=1 // pred_region
      %110 = dma.done [#allocation5], 128
    $region41: #{manager_forward.1} parent=1 // pred_fallthru
      _
    // Predicated region
    $region42: #{manager_forward.1} parent=1 // pred_check
      _
    $region43: #{manager_forward.1} parent=1 // pred_check_branch
      %112 = sbr.rel (0) target = $region45
    $region44: #{manager_forward.1} parent=1 // pred_region
      %114 = dma.done [#allocation8], 512
    $region45: #{manager_forward.1} parent=1 // pred_fallthru
      _
    // Predicated region
    $region46: #{manager_forward.1} parent=1 // pred_check
      _
    $region47: #{manager_forward.1} parent=1 // pred_check_branch
      %116 = sbr.rel (0) target = $region49
    $region48: #{manager_forward.1} parent=1 // pred_region
      %118 = dma.done [#allocation8], 512
    $region49: #{manager_forward.1} parent=1 // pred_fallthru
      _
    // Predicated region
    $region50: #{manager_forward.1} parent=1 // pred_check
      _
    $region51: #{manager_forward.1} parent=1 // pred_check_branch
      %120 = sbr.rel (0) target = $region53
    $region52: #{manager_forward.1} parent=1 // pred_region
      %122 = dma.done [#allocation11], 512
    $region53: #{manager_forward.1} parent=1 // pred_fallthru
      _
    // Predicated region
    $region54: #{manager_forward.1} parent=1 // pred_check
      _
    $region55: #{manager_forward.1} parent=1 // pred_check_branch
      %124 = sbr.rel (0) target = $region57
    $region56: #{manager_forward.1} parent=1 // pred_region
      %126 = dma.done [#allocation11], 64
    $region57: #{manager_forward.1} parent=1 // pred_fallthru
      _
    %v127 = vld [vmem:[#allocation2] sm:$0xff]
    %v128 = vld [vmem:[#allocation4] sm:$0xff]
    %v129 = vld [vmem:[#allocation6] sm:$0xff]
    %v130 = vld [vmem:[#allocation12] sm:$0x1]
    %v131 = vld [vmem:[#allocation12 + $0x1] sm:$0x1]
    %v132 = vld [vmem:[#allocation12 + $0x2] sm:$0x1]
    %v133 = vld [vmem:[#allocation12 + $0x3] sm:$0x1]
    %v134 = vld [vmem:[#allocation7] sm:$0xff]
    %v135 = vld [vmem:[#allocation7 + $0x8] sm:$0xff]
    %v136 = vld [vmem:[#allocation7 + $0x10] sm:$0xff]
    %v137 = vld [vmem:[#allocation7 + $0x18] sm:$0xff]
    %v138 = vperm.slane %v130, 0
    %vm139 = vcmask 261120
    %v141 = vsel %vm139, %v127, 0
    %143 = vmatpush.msra.mxu0 0.0
    %144 = vmatpush.msra.mxu0 0.0
    %145 = vmatpush.msra.mxu0 0.0
    %146 = vmatpush.msra.mxu0 0.0
    %147 = vmatpush.msra.mxu0 0.0
    %148 = vmatpush.msra.mxu0 0.0
    %149 = vmatpush.msra.mxu0 0.0
    %150 = vmatpush.msra.mxu0 0.0
    %151 = vmatpush.msra.mxu0 0.0
    %152 = vmatpush.msra.mxu0 0.0
    %153 = vmatpush.msra.mxu0 0.0
    %154 = vmatpush.msra.mxu0 0.0
    %155 = vmatpush.msra.mxu0 %v137
    %156 = vmatpush.msra.mxu0 %v136
    %157 = vmatpush.msra.mxu0 %v135
    %158 = vmatpush.msra.mxu0 %v134
    %159 = vmatmul.f32.gmra.mxu0 %v141
    %v160 = vpop.f32.mrf.mxu0
    %v161 = vadd.f32 %v138, %v160
    %162 = vdwg.mxu0
    %v163 = vmax.f32 %v161, 0.0
    %v164 = vld [vmem:[#allocation9] sm:$0xff]
    %v165 = vld [vmem:[#allocation9 + $0x8] sm:$0xff]
    %v166 = vld [vmem:[#allocation9 + $0x10] sm:$0xff]
    %v167 = vld [vmem:[#allocation9 + $0x18] sm:$0xff]
    %v168 = vld [vmem:[#allocation10] sm:$0xff]
    %v169 = vld [vmem:[#allocation10 + $0x8] sm:$0xff]
    %v170 = vld [vmem:[#allocation10 + $0x10] sm:$0xff]
    %v171 = vld [vmem:[#allocation10 + $0x18] sm:$0xff]
    %v173 = vsel %vm139, %v128, 0
    %175 = vmatpush.msra.mxu0 0.0
    %176 = vmatpush.msra.mxu0 0.0
    %177 = vmatpush.msra.mxu0 0.0
    %178 = vmatpush.msra.mxu0 0.0
    %179 = vmatpush.msra.mxu0 0.0
    %180 = vmatpush.msra.mxu0 0.0
    %181 = vmatpush.msra.mxu0 0.0
    %182 = vmatpush.msra.mxu0 0.0
    %183 = vmatpush.msra.mxu0 0.0
    %184 = vmatpush.msra.mxu0 0.0
    %185 = vmatpush.msra.mxu0 0.0
    %186 = vmatpush.msra.mxu0 0.0
    %187 = vmatpush.msra.mxu0 %v171
    %188 = vmatpush.msra.mxu0 %v170
    %189 = vmatpush.msra.mxu0 %v169
    %190 = vmatpush.msra.mxu0 %v168
    %191 = vmatmul.f32.gmra.mxu0 %v173
    %v192 = vpop.f32.mrf.mxu0
    %v193 = vadd.f32 0.0, %v192
    %194 = vdwg.mxu0
    %v196 = vsel %vm139, %v163, 0
    %198 = vmatpush.msra.mxu0 0.0
    %199 = vmatpush.msra.mxu0 0.0
    %200 = vmatpush.msra.mxu0 0.0
    %201 = vmatpush.msra.mxu0 0.0
    %202 = vmatpush.msra.mxu0 0.0
    %203 = vmatpush.msra.mxu0 0.0
    %204 = vmatpush.msra.mxu0 0.0
    %205 = vmatpush.msra.mxu0 0.0
    %206 = vmatpush.msra.mxu0 0.0
    %207 = vmatpush.msra.mxu0 0.0
    %208 = vmatpush.msra.mxu0 0.0
    %209 = vmatpush.msra.mxu0 0.0
    %210 = vmatpush.msra.mxu0 %v167
    %211 = vmatpush.msra.mxu0 %v166
    %212 = vmatpush.msra.mxu0 %v165
    %213 = vmatpush.msra.mxu0 %v164
    %214 = vmatmul.f32.gmra.mxu0 %v196
    %v215 = vpop.f32.mrf.mxu0
    %v216 = vadd.f32 %v193, %v215
    %217 = vdwg.mxu0
    %v218 = vperm.slane %v131, 0
    %v219 = vadd.f32 %v216, %v218
    %v220 = vxor.u32 %v219, 2147483648
    %v221 = vmul.f32 %v220, 1.442695
    %v222 = vpow.pop %v221
    %v223 = vadd.f32 %v222, 1.0
    %v224 = vrcp.pop %v223
    %v225 = vmul.f32 %v223, %v224
    %v226 = vsub.f32 1.0, %v225
    %v227 = vmul.f32 %v224, %v226
    %v228 = vadd.f32 %v224, %v227
    %vm229 = vweird.f32 %v223
    %vm230 = vweird.f32 %v224
    %vm231 = vmor %vm229, %vm230
    %v232 = vsel %vm231, %v224, %v228
    %v233 = vand.u32 2147483647, %v223
    %vm234 = vcmp.eq.f32.partialorder %v233, 8.507059e+37
    %v235 = vand.u32 %v223, 2147483648
    %v236 = vor.u32 1.1754944e-38, %v235
    %v237 = vsel %vm234, %v236, %v232
    %v238 = vmul.f32 1.0, %v237
    %v239 = vtanh.pop %v219
    %241 = vrot.lane.b32.xlu0 %v129, 32
    %v242 = vpop.permute.xlu0 %241
    %v244 = vmul.f32 %v238, %v242
    %246 = vrot.lane.b32.xlu0 %v239, 64
    %v247 = vpop.permute.xlu0 %246
    %v249 = vmul.f32 %v238, %v247
    %251 = vrot.lane.b32.xlu0 %v249, 32
    %v252 = vpop.permute.xlu0 %251
    %v254 = vadd.f32 %v244, %v252
    %v255 = vtanh.pop %v254
    %257 = vrot.lane.b32.xlu0 %v255, 64
    %v258 = vpop.permute.xlu0 %257
    %v260 = vmul.f32 %v238, %v258
    %v261 = vmul.f32 %v260, %v260
    %263 = vrot.lane.b32.xlu0 %v261, 32
    %v264 = vpop.permute.xlu0 %263
    %v266 = vsel %vm139, %v264, 0.0
    %267 = vadd.xlane.f32.xlu0 %v266
    %v268 = vpop.xlane.xlu0 %267
    %v269 = vmax.f32 %v268, 1e-24
    %v270 = vrsqrt.pop %v269
    %v271 = vmul.f32 %v270, %v269
    %v272 = vmul.f32 %v271, %v270
    %v273 = vmul.f32 0.5, %v272
    %v274 = vsub.f32 1.5, %v273
    %v275 = vmul.f32 %v270, %v274
    %vm276 = vweird.f32 %v269
    %vm277 = vweird.f32 %v270
    %vm278 = vmor %vm276, %vm277
    %v279 = vsel %vm278, %v270, %v275
    %v280 = vmul.f32 %v260, %v279
    %v281 = vperm.slane %v132, 0
    %283 = vrot.lane.b32.xlu0 %v281, 96
    %v284 = vpop.permute.xlu0 %283
    %v286 = vmul.f32 %v260, %v284
    %288 = vrot.lane.b32.xlu0 %v286, 32
    %v289 = vpop.permute.xlu0 %288
    %v291 = vsel %vm139, %v289, 0.0
    %292 = vadd.xlane.f32.xlu0 %v291
    %v293 = vpop.xlane.xlu0 %292
    %v294 = vperm.slane %v133, 0
    %v295 = vadd.f32 %v293, %v294
    %297 = vset.pattern.permute.xlu0 0
    %298 = vperm.xlu0 %297, %v295
    %v299 = vpop.permute.xlu0 %298
    %302 = vrot.lane.b32.xlu0 %v280, 64
    %v303 = vpop.permute.xlu0 %302
    %306 = vrot.lane.b32.xlu0 %v254, 32
    %v307 = vpop.permute.xlu0 %306
    %v309 = vsel %vm139, %v163, %v303
    %vm310 = vcmask 523264
    %v311 = vsel %vm310, %v309, %v307
    %vm312 = vcmask 785408
    %v313 = vsel %vm312, %v311, %v299
    %314 = vst [vmem:[%s7] sm:$0xff] %v313
    // Predicated region
    $region58: #{manager_forward.1} parent=1 // pred_check
      _
    $region59: #{manager_forward.1} parent=1 // pred_check_branch
      %316 = sbr.rel (0) target = $region61
    $region60: #{manager_forward.1} parent=1 // pred_region
      _
    $region61: #{manager_forward.1} parent=1 // pred_fallthru
      _
    // Predicated region
    $region62: #{manager_forward.1} parent=1 // pred_check
      _
    $region63: #{manager_forward.1} parent=1 // pred_check_branch
      %318 = sbr.rel (0) target = $region65
    $region64: #{manager_forward.1} parent=1 // pred_region
      _
    $region65: #{manager_forward.1} parent=1 // pred_fallthru
      _
    %319 = vsyncpa [#allocation3], 1
    %320 = vsyncpa [#allocation5], 1
    %321 = vsyncpa [#allocation8], 1
    %322 = vsyncpa [#allocation11], 1

</llo_original>
